<compile_context>
chip_gen: v7x
topology: tpu7x:2x2x1
jax: 0.10.0
libtpu: 0.0.40
codegen_flags: <defaults>
</compile_context>

<pallas_src>
import jax
import jax.numpy as jnp
from jax.experimental import pallas as pl
from jax.experimental.pallas import tpu as pltpu


def lstm_chunk_kernel(p_ref, whh_ref, wfc_ref, bfc_ref, out_ref, h_sc, c_sc):
    """p_ref:   (Tc, B, 4H) bf16  input projection + fused bias, gates (i,f,o,g)
       whh_ref: (H, 4H)     bf16  recurrent weight, transposed, gates (i,f,o,g)
       wfc_ref: (H, Op)     bf16  final Linear weight, transposed, lane-padded
       bfc_ref: (1, Op)     f32   final Linear bias, lane-padded
       out_ref: (B, Op)     f32   fc(h_T)
       h_sc/c_sc: (B, H)    f32   hidden/cell state carried across T-chunks"""
    pid = pl.program_id(0)
    nprog = pl.num_programs(0)
    Tc = p_ref.shape[0]
    H = whh_ref.shape[0]

    # Zero the carried state on the first chunk.
    @pl.when(pid == 0)
    def _():
        h_sc[...] = jnp.zeros_like(h_sc)
        c_sc[...] = jnp.zeros_like(c_sc)

    def step(t, carry):
        h, c = carry
        # Serial path per step: one bf16 MXU push (f32 accumulation) + gates.
        gates = p_ref[t].astype(jnp.float32) + jnp.dot(
            h.astype(jnp.bfloat16), whh_ref[...],
            preferred_element_type=jnp.float32)
        # Gate order (i, f, o, g): sigmoid on the contiguous 3H prefix,
        # tanh only on the last H — all elementwise math in f32.
        sg = jax.nn.sigmoid(gates[:, :3 * H])
        g_g = jnp.tanh(gates[:, 3 * H:])
        i_g = sg[:, 0 * H:1 * H]
        f_g = sg[:, 1 * H:2 * H]
        o_g = sg[:, 2 * H:3 * H]
        c_new = f_g * c + i_g * g_g
        h_new = o_g * jnp.tanh(c_new)
        return (h_new, c_new)

    # Short unrolled inner time loop over this chunk (h/c live in vregs).
    h, c = jax.lax.fori_loop(0, Tc, step, (h_sc[...], c_sc[...]), unroll=True)
    h_sc[...] = h
    c_sc[...] = c

    # Fused final Linear on the last hidden state, last chunk only.
    @pl.when(pid == nprog - 1)
    def _():
        out_ref[...] = (jnp.dot(h.astype(jnp.bfloat16), wfc_ref[...],
                                preferred_element_type=jnp.float32)
                        + bfc_ref[...]).astype(out_ref.dtype)


def lstm_model_forward(x, w_ih, w_hh, b_ih, b_hh, w_fc, b_fc, *, t_chunk=None):
    """x: (B, T, I).  Weight shapes follow nn.LSTM / nn.Linear conventions:
       w_ih (4H, I), w_hh (4H, H), b_ih/b_hh (4H,), w_fc (O, H), b_fc (O,)."""
    B, T, I = x.shape
    H = w_hh.shape[1]
    O = w_fc.shape[0]

    # Pad batch to a full sublane set (multiple of 8) and the fc output lanes
    # to a multiple of 128 (lane-dense unmasked store); slice back at the end.
    B_pad = max(8, ((B + 7) // 8) * 8)
    O_pad = max(128, ((O + 127) // 128) * 128)

    # T-chunk: must evenly divide T (padding time steps would corrupt the
    # recurrence).  Production sizing keeps 2 * Tc*B*4H*2B (double-buffered
    # bf16 P chunks) + weights well under the per-generation VMEM budget.
    if t_chunk is None:
        t_chunk = 64
    t_chunk = max(1, min(t_chunk, T))
    while T % t_chunk != 0:
        t_chunk -= 1
    n_chunks = T // t_chunk

    # Permute the 4H gate axis once: PyTorch (i, f, g, o) -> (i, f, o, g).
    perm = jnp.concatenate([jnp.arange(0, H), jnp.arange(H, 2 * H),
                            jnp.arange(3 * H, 4 * H), jnp.arange(2 * H, 3 * H)])
    w_ih_p = w_ih[perm]                                   # (4H, I)
    w_hh_p = w_hh[perm]                                   # (4H, H)
    bias_p = (b_ih + b_hh)[perm].astype(jnp.float32)      # (4H,)

    # Hoisted, time-parallel input projection with bias folded in, produced
    # directly in (T, B_pad, 4H) layout (transpose fuses into the matmul),
    # then cast to bf16 for the MXU + halved HBM/VMEM traffic.
    x_pad = jnp.pad(x.astype(jnp.float32), ((0, B_pad - B), (0, 0), (0, 0)))
    p = (jnp.einsum('bti,gi->tbg', x_pad, w_ih_p.astype(jnp.float32))
         + bias_p).astype(jnp.bfloat16)                   # (T, B_pad, 4H)

    whh_t = jnp.transpose(w_hh_p).astype(jnp.bfloat16)    # (H, 4H)
    wfc_t = jnp.pad(jnp.transpose(w_fc), ((0, 0), (0, O_pad - O))
                    ).astype(jnp.bfloat16)                # (H, O_pad)
    bfc = jnp.pad(b_fc, (0, O_pad - O)).reshape(1, O_pad).astype(jnp.float32)

    cost = pl.CostEstimate(
        flops=2 * T * B_pad * H * 4 * H + 2 * B_pad * H * O_pad,
        transcendentals=T * B_pad * 5 * H,
        bytes_accessed=(p.size * 2 + whh_t.size * 2 + wfc_t.size * 2
                        + bfc.size * 4 + B_pad * O_pad * 4),
    )

    out_full = pl.pallas_call(
        lstm_chunk_kernel,
        out_shape=jax.ShapeDtypeStruct((B_pad, O_pad), jnp.float32),
        grid_spec=pltpu.PrefetchScalarGridSpec(
            num_scalar_prefetch=0,
            grid=(n_chunks,),
            in_specs=[
                # Streamed, double-buffered P chunks.
                pl.BlockSpec((t_chunk, B_pad, 4 * H), lambda i: (i, 0, 0)),
                # Reused operands: constant index_map -> DMA'd once, resident.
                pl.BlockSpec((H, 4 * H), lambda i: (0, 0)),
                pl.BlockSpec((H, O_pad), lambda i: (0, 0)),
                pl.BlockSpec((1, O_pad), lambda i: (0, 0)),
            ],
            out_specs=pl.BlockSpec((B_pad, O_pad), lambda i: (0, 0)),
            scratch_shapes=[
                pltpu.VMEM((B_pad, H), jnp.float32),   # h carried across chunks
                pltpu.VMEM((B_pad, H), jnp.float32),   # c carried across chunks
            ],
        ),
        compiler_params=pltpu.CompilerParams(
            dimension_semantics=("arbitrary",),        # serial recurrence axis
            vmem_limit_bytes=16 * 1024 * 1024,         # safe on v5e/v6e/v7x
        ),
        cost_estimate=cost,
    )(p, whh_t, wfc_t, bfc)

    return out_full[:B, :O]


def lstm_model_reference(x, w_ih, w_hh, b_ih, b_hh, w_fc, b_fc):
    """Pure-JAX f32 reference mirroring nn.LSTM (1 layer) + nn.Linear."""
    B, T, I = x.shape
    H = w_hh.shape[1]
    h = jnp.zeros((B, H), jnp.float32)
    c = jnp.zeros((B, H), jnp.float32)

    def step(carry, x_t):
        h, c = carry
        gates = x_t @ w_ih.T + h @ w_hh.T + b_ih + b_hh
        i_g = jax.nn.sigmoid(gates[:, 0 * H:1 * H])
        f_g = jax.nn.sigmoid(gates[:, 1 * H:2 * H])
        g_g = jnp.tanh(gates[:, 2 * H:3 * H])
        o_g = jax.nn.sigmoid(gates[:, 3 * H:4 * H])
        c_new = f_g * c + i_g * g_g
        h_new = o_g * jnp.tanh(c_new)
        return (h_new, c_new), None

    (h, c), _ = jax.lax.scan(step, (h, c), jnp.transpose(x, (1, 0, 2)))
    return h @ w_fc.T + b_fc


if __name__ == "__main__":
    # Small shapes consistent with the module's forward.
    B, T, I, H, O = 2, 8, 16, 32, 4

    key = jax.random.PRNGKey(0)
    ks = jax.random.split(key, 7)
    bound = 1.0 / jnp.sqrt(H)  # PyTorch default uniform init bound

    x = jax.random.normal(ks[0], (B, T, I), dtype=jnp.float32)
    w_ih = jax.random.uniform(ks[1], (4 * H, I), jnp.float32, -bound, bound)
    w_hh = jax.random.uniform(ks[2], (4 * H, H), jnp.float32, -bound, bound)
    b_ih = jax.random.uniform(ks[3], (4 * H,), jnp.float32, -bound, bound)
    b_hh = jax.random.uniform(ks[4], (4 * H,), jnp.float32, -bound, bound)
    w_fc = jax.random.uniform(ks[5], (O, H), jnp.float32, -bound, bound)
    b_fc = jax.random.uniform(ks[6], (O,), jnp.float32, -bound, bound)

    # t_chunk=4 -> grid=(2,), exercising the streamed / double-buffered path.
    out = lstm_model_forward(x, w_ih, w_hh, b_ih, b_hh, w_fc, b_fc, t_chunk=4)
    out = jax.block_until_ready(out)

    ref = lstm_model_reference(x, w_ih, w_hh, b_ih, b_hh, w_fc, b_fc)
    assert out.shape == (B, O)
    # bf16 MXU operands (f32 accumulation) -> relaxed tolerance vs f32 reference.
    assert jnp.allclose(out, ref, atol=3e-2, rtol=3e-2), "mismatch vs JAX reference"

    print("KERNEL_OK")
</pallas_src>

<mosaic_0001>
module attributes {stable_mosaic.version = 11 : i64} {
  func.func @lstm_chunk_kernel(%arg0: i32, %arg1: memref<4x8x128xbf16, #tpu.memory_space<vmem>>, %arg2: memref<32x128xbf16, #tpu.memory_space<vmem>>, %arg3: memref<32x128xbf16, #tpu.memory_space<vmem>>, %arg4: memref<1x128xf32, #tpu.memory_space<vmem>>, %arg5: memref<8x128xf32, #tpu.memory_space<vmem>>, %arg6: memref<8x32xf32, #tpu.memory_space<vmem>>, %arg7: memref<8x32xf32, #tpu.memory_space<vmem>>) attributes {dimension_semantics = [#tpu.dimension_semantics<arbitrary>], iteration_bounds = array<i64: 2>, scalar_prefetch = 0 : i64, scratch_operands = 2 : i64, tpu.core_type = #tpu.core_type<tc>, window_params = [{transform_indices = @transform_0, window_bounds = array<i64: 4, 8, 128>}, {pipeline_mode = #tpu.pipeline_mode<synchronous>, transform_indices = @transform_1, window_bounds = array<i64: 32, 128>}, {pipeline_mode = #tpu.pipeline_mode<synchronous>, transform_indices = @transform_2, window_bounds = array<i64: 32, 128>}, {pipeline_mode = #tpu.pipeline_mode<synchronous>, transform_indices = @transform_3, window_bounds = array<i64: 1, 128>}, {pipeline_mode = #tpu.pipeline_mode<synchronous>, transform_indices = @transform_4, window_bounds = array<i64: 8, 128>}]} {
    %c0_i32 = arith.constant 0 : i32
    %0 = arith.cmpi eq, %arg0, %c0_i32 : i32
    %1 = arith.extui %0 : i1 to i32
    %c0_i32_0 = arith.constant 0 : i32
    %2 = arith.cmpi ne, %1, %c0_i32_0 : i32
    scf.if %2 {
      %cst_34 = arith.constant 0.000000e+00 : f32
      %106 = vector.broadcast %cst_34 : f32 to vector<8x32xf32>
      %c0_35 = arith.constant 0 : index
      %c0_36 = arith.constant 0 : index
      %107 = vector.load %arg6[%c0_35, %c0_36] : memref<8x32xf32, #tpu.memory_space<vmem>>, vector<8x32xf32>
      tpu.vector_store %arg6[%c0_35, %c0_36], %106 {strides = array<i32>} : memref<8x32xf32, #tpu.memory_space<vmem>>, vector<8x32xf32>,
      %cst_37 = arith.constant 0.000000e+00 : f32
      %108 = vector.broadcast %cst_37 : f32 to vector<8x32xf32>
      %c0_38 = arith.constant 0 : index
      %c0_39 = arith.constant 0 : index
      %109 = vector.load %arg7[%c0_38, %c0_39] : memref<8x32xf32, #tpu.memory_space<vmem>>, vector<8x32xf32>
      tpu.vector_store %arg7[%c0_38, %c0_39], %108 {strides = array<i32>} : memref<8x32xf32, #tpu.memory_space<vmem>>, vector<8x32xf32>,
    } else {
    }
    %c0 = arith.constant 0 : index
    %c0_1 = arith.constant 0 : index
    %3 = vector.load %arg6[%c0, %c0_1] : memref<8x32xf32, #tpu.memory_space<vmem>>, vector<8x32xf32>
    %c0_2 = arith.constant 0 : index
    %c0_3 = arith.constant 0 : index
    %4 = vector.load %arg7[%c0_2, %c0_3] : memref<8x32xf32, #tpu.memory_space<vmem>>, vector<8x32xf32>
    %c0_i32_4 = arith.constant 0 : i32
    %5 = arith.index_cast %c0_i32_4 : i32 to index
    %c0_5 = arith.constant 0 : index
    %c0_6 = arith.constant 0 : index
    %6 = vector.load %arg1[%5, %c0_5, %c0_6] : memref<4x8x128xbf16, #tpu.memory_space<vmem>>, vector<1x8x128xbf16>
    %7 = vector.shape_cast %6 : vector<1x8x128xbf16> to vector<8x128xbf16>
    %8 = arith.extf %7 : vector<8x128xbf16> to vector<8x128xf32>
    %9 = arith.truncf %3 : vector<8x32xf32> to vector<8x32xbf16>
    %c0_7 = arith.constant 0 : index
    %c0_8 = arith.constant 0 : index
    %10 = vector.load %arg2[%c0_7, %c0_8] : memref<32x128xbf16, #tpu.memory_space<vmem>>, vector<32x128xbf16>
    %cst = arith.constant dense<0.000000e+00> : vector<8x128xf32>
    %11 = tpu.matmul %9, %10, %cst {dimension_numbers = #tpu.dot_dimension_numbers<[1], [0], [0], [1], [0, 0, 1, 1], [], []>} : vector<8x32xbf16>, vector<32x128xbf16>, vector<8x128xf32> -> vector<8x128xf32>
    %12 = arith.addf %8, %11 : vector<8x128xf32>
    %13 = vector.extract_strided_slice %12 {offsets = [0, 0], sizes = [8, 96], strides = [1, 1]} : vector<8x128xf32> to vector<8x96xf32>
    %14 = arith.negf %13 : vector<8x96xf32>
    %15 = math.exp %14 : vector<8x96xf32>
    %cst_9 = arith.constant 1.000000e+00 : f32
    %16 = vector.broadcast %cst_9 : f32 to vector<8x96xf32>
    %17 = arith.addf %16, %15 : vector<8x96xf32>
    %18 = arith.divf %16, %17 : vector<8x96xf32>
    %19 = vector.extract_strided_slice %12 {offsets = [0, 96], sizes = [8, 32], strides = [1, 1]} : vector<8x128xf32> to vector<8x32xf32>
    %20 = math.tanh %19 : vector<8x32xf32>
    %21 = vector.extract_strided_slice %18 {offsets = [0, 0], sizes = [8, 32], strides = [1, 1]} : vector<8x96xf32> to vector<8x32xf32>
    %22 = vector.extract_strided_slice %18 {offsets = [0, 32], sizes = [8, 32], strides = [1, 1]} : vector<8x96xf32> to vector<8x32xf32>
    %23 = vector.extract_strided_slice %18 {offsets = [0, 64], sizes = [8, 32], strides = [1, 1]} : vector<8x96xf32> to vector<8x32xf32>
    %24 = arith.mulf %22, %4 : vector<8x32xf32>
    %25 = arith.mulf %21, %20 : vector<8x32xf32>
    %26 = arith.addf %24, %25 : vector<8x32xf32>
    %27 = math.tanh %26 : vector<8x32xf32>
    %28 = arith.mulf %23, %27 : vector<8x32xf32>
    %c1_i32 = arith.constant 1 : i32
    %29 = arith.index_cast %c1_i32 : i32 to index
    %c0_10 = arith.constant 0 : index
    %c0_11 = arith.constant 0 : index
    %30 = vector.load %arg1[%29, %c0_10, %c0_11] : memref<4x8x128xbf16, #tpu.memory_space<vmem>>, vector<1x8x128xbf16>
    %31 = vector.shape_cast %30 : vector<1x8x128xbf16> to vector<8x128xbf16>
    %32 = arith.extf %31 : vector<8x128xbf16> to vector<8x128xf32>
    %33 = arith.truncf %28 : vector<8x32xf32> to vector<8x32xbf16>
    %c0_12 = arith.constant 0 : index
    %c0_13 = arith.constant 0 : index
    %34 = vector.load %arg2[%c0_12, %c0_13] : memref<32x128xbf16, #tpu.memory_space<vmem>>, vector<32x128xbf16>
    %cst_14 = arith.constant dense<0.000000e+00> : vector<8x128xf32>
    %35 = tpu.matmul %33, %34, %cst_14 {dimension_numbers = #tpu.dot_dimension_numbers<[1], [0], [0], [1], [0, 0, 1, 1], [], []>} : vector<8x32xbf16>, vector<32x128xbf16>, vector<8x128xf32> -> vector<8x128xf32>
    %36 = arith.addf %32, %35 : vector<8x128xf32>
    %37 = vector.extract_strided_slice %36 {offsets = [0, 0], sizes = [8, 96], strides = [1, 1]} : vector<8x128xf32> to vector<8x96xf32>
    %38 = arith.negf %37 : vector<8x96xf32>
    %39 = math.exp %38 : vector<8x96xf32>
    %cst_15 = arith.constant 1.000000e+00 : f32
    %40 = vector.broadcast %cst_15 : f32 to vector<8x96xf32>
    %41 = arith.addf %40, %39 : vector<8x96xf32>
    %42 = arith.divf %40, %41 : vector<8x96xf32>
    %43 = vector.extract_strided_slice %36 {offsets = [0, 96], sizes = [8, 32], strides = [1, 1]} : vector<8x128xf32> to vector<8x32xf32>
    %44 = math.tanh %43 : vector<8x32xf32>
    %45 = vector.extract_strided_slice %42 {offsets = [0, 0], sizes = [8, 32], strides = [1, 1]} : vector<8x96xf32> to vector<8x32xf32>
    %46 = vector.extract_strided_slice %42 {offsets = [0, 32], sizes = [8, 32], strides = [1, 1]} : vector<8x96xf32> to vector<8x32xf32>
    %47 = vector.extract_strided_slice %42 {offsets = [0, 64], sizes = [8, 32], strides = [1, 1]} : vector<8x96xf32> to vector<8x32xf32>
    %48 = arith.mulf %46, %26 : vector<8x32xf32>
    %49 = arith.mulf %45, %44 : vector<8x32xf32>
    %50 = arith.addf %48, %49 : vector<8x32xf32>
    %51 = math.tanh %50 : vector<8x32xf32>
    %52 = arith.mulf %47, %51 : vector<8x32xf32>
    %c2_i32 = arith.constant 2 : i32
    %53 = arith.index_cast %c2_i32 : i32 to index
    %c0_16 = arith.constant 0 : index
    %c0_17 = arith.constant 0 : index
    %54 = vector.load %arg1[%53, %c0_16, %c0_17] : memref<4x8x128xbf16, #tpu.memory_space<vmem>>, vector<1x8x128xbf16>
    %55 = vector.shape_cast %54 : vector<1x8x128xbf16> to vector<8x128xbf16>
    %56 = arith.extf %55 : vector<8x128xbf16> to vector<8x128xf32>
    %57 = arith.truncf %52 : vector<8x32xf32> to vector<8x32xbf16>
    %c0_18 = arith.constant 0 : index
    %c0_19 = arith.constant 0 : index
    %58 = vector.load %arg2[%c0_18, %c0_19] : memref<32x128xbf16, #tpu.memory_space<vmem>>, vector<32x128xbf16>
    %cst_20 = arith.constant dense<0.000000e+00> : vector<8x128xf32>
    %59 = tpu.matmul %57, %58, %cst_20 {dimension_numbers = #tpu.dot_dimension_numbers<[1], [0], [0], [1], [0, 0, 1, 1], [], []>} : vector<8x32xbf16>, vector<32x128xbf16>, vector<8x128xf32> -> vector<8x128xf32>
    %60 = arith.addf %56, %59 : vector<8x128xf32>
    %61 = vector.extract_strided_slice %60 {offsets = [0, 0], sizes = [8, 96], strides = [1, 1]} : vector<8x128xf32> to vector<8x96xf32>
    %62 = arith.negf %61 : vector<8x96xf32>
    %63 = math.exp %62 : vector<8x96xf32>
    %cst_21 = arith.constant 1.000000e+00 : f32
    %64 = vector.broadcast %cst_21 : f32 to vector<8x96xf32>
    %65 = arith.addf %64, %63 : vector<8x96xf32>
    %66 = arith.divf %64, %65 : vector<8x96xf32>
    %67 = vector.extract_strided_slice %60 {offsets = [0, 96], sizes = [8, 32], strides = [1, 1]} : vector<8x128xf32> to vector<8x32xf32>
    %68 = math.tanh %67 : vector<8x32xf32>
    %69 = vector.extract_strided_slice %66 {offsets = [0, 0], sizes = [8, 32], strides = [1, 1]} : vector<8x96xf32> to vector<8x32xf32>
    %70 = vector.extract_strided_slice %66 {offsets = [0, 32], sizes = [8, 32], strides = [1, 1]} : vector<8x96xf32> to vector<8x32xf32>
    %71 = vector.extract_strided_slice %66 {offsets = [0, 64], sizes = [8, 32], strides = [1, 1]} : vector<8x96xf32> to vector<8x32xf32>
    %72 = arith.mulf %70, %50 : vector<8x32xf32>
    %73 = arith.mulf %69, %68 : vector<8x32xf32>
    %74 = arith.addf %72, %73 : vector<8x32xf32>
    %75 = math.tanh %74 : vector<8x32xf32>
    %76 = arith.mulf %71, %75 : vector<8x32xf32>
    %c3_i32 = arith.constant 3 : i32
    %77 = arith.index_cast %c3_i32 : i32 to index
    %c0_22 = arith.constant 0 : index
    %c0_23 = arith.constant 0 : index
    %78 = vector.load %arg1[%77, %c0_22, %c0_23] : memref<4x8x128xbf16, #tpu.memory_space<vmem>>, vector<1x8x128xbf16>
    %79 = vector.shape_cast %78 : vector<1x8x128xbf16> to vector<8x128xbf16>
    %80 = arith.extf %79 : vector<8x128xbf16> to vector<8x128xf32>
    %81 = arith.truncf %76 : vector<8x32xf32> to vector<8x32xbf16>
    %c0_24 = arith.constant 0 : index
    %c0_25 = arith.constant 0 : index
    %82 = vector.load %arg2[%c0_24, %c0_25] : memref<32x128xbf16, #tpu.memory_space<vmem>>, vector<32x128xbf16>
    %cst_26 = arith.constant dense<0.000000e+00> : vector<8x128xf32>
    %83 = tpu.matmul %81, %82, %cst_26 {dimension_numbers = #tpu.dot_dimension_numbers<[1], [0], [0], [1], [0, 0, 1, 1], [], []>} : vector<8x32xbf16>, vector<32x128xbf16>, vector<8x128xf32> -> vector<8x128xf32>
    %84 = arith.addf %80, %83 : vector<8x128xf32>
    %85 = vector.extract_strided_slice %84 {offsets = [0, 0], sizes = [8, 96], strides = [1, 1]} : vector<8x128xf32> to vector<8x96xf32>
    %86 = arith.negf %85 : vector<8x96xf32>
    %87 = math.exp %86 : vector<8x96xf32>
    %cst_27 = arith.constant 1.000000e+00 : f32
    %88 = vector.broadcast %cst_27 : f32 to vector<8x96xf32>
    %89 = arith.addf %88, %87 : vector<8x96xf32>
    %90 = arith.divf %88, %89 : vector<8x96xf32>
    %91 = vector.extract_strided_slice %84 {offsets = [0, 96], sizes = [8, 32], strides = [1, 1]} : vector<8x128xf32> to vector<8x32xf32>
    %92 = math.tanh %91 : vector<8x32xf32>
    %93 = vector.extract_strided_slice %90 {offsets = [0, 0], sizes = [8, 32], strides = [1, 1]} : vector<8x96xf32> to vector<8x32xf32>
    %94 = vector.extract_strided_slice %90 {offsets = [0, 32], sizes = [8, 32], strides = [1, 1]} : vector<8x96xf32> to vector<8x32xf32>
    %95 = vector.extract_strided_slice %90 {offsets = [0, 64], sizes = [8, 32], strides = [1, 1]} : vector<8x96xf32> to vector<8x32xf32>
    %96 = arith.mulf %94, %74 : vector<8x32xf32>
    %97 = arith.mulf %93, %92 : vector<8x32xf32>
    %98 = arith.addf %96, %97 : vector<8x32xf32>
    %99 = math.tanh %98 : vector<8x32xf32>
    %100 = arith.mulf %95, %99 : vector<8x32xf32>
    %c4_i32 = arith.constant 4 : i32
    %c0_28 = arith.constant 0 : index
    %c0_29 = arith.constant 0 : index
    %101 = vector.load %arg6[%c0_28, %c0_29] : memref<8x32xf32, #tpu.memory_space<vmem>>, vector<8x32xf32>
    tpu.vector_store %arg6[%c0_28, %c0_29], %100 {strides = array<i32>} : memref<8x32xf32, #tpu.memory_space<vmem>>, vector<8x32xf32>,
    %c0_30 = arith.constant 0 : index
    %c0_31 = arith.constant 0 : index
    %102 = vector.load %arg7[%c0_30, %c0_31] : memref<8x32xf32, #tpu.memory_space<vmem>>, vector<8x32xf32>
    tpu.vector_store %arg7[%c0_30, %c0_31], %98 {strides = array<i32>} : memref<8x32xf32, #tpu.memory_space<vmem>>, vector<8x32xf32>,
    %c1_i32_32 = arith.constant 1 : i32
    %103 = arith.cmpi eq, %arg0, %c1_i32_32 : i32
    %104 = arith.extui %103 : i1 to i32
    %c0_i32_33 = arith.constant 0 : i32
    %105 = arith.cmpi ne, %104, %c0_i32_33 : i32
    scf.if %105 {
      %106 = arith.truncf %100 : vector<8x32xf32> to vector<8x32xbf16>
      %c0_34 = arith.constant 0 : index
      %c0_35 = arith.constant 0 : index
      %107 = vector.load %arg3[%c0_34, %c0_35] : memref<32x128xbf16, #tpu.memory_space<vmem>>, vector<32x128xbf16>
      %cst_36 = arith.constant dense<0.000000e+00> : vector<8x128xf32>
      %108 = tpu.matmul %106, %107, %cst_36 {dimension_numbers = #tpu.dot_dimension_numbers<[1], [0], [0], [1], [0, 0, 1, 1], [], []>} : vector<8x32xbf16>, vector<32x128xbf16>, vector<8x128xf32> -> vector<8x128xf32>
      %c0_37 = arith.constant 0 : index
      %c0_38 = arith.constant 0 : index
      %109 = vector.load %arg4[%c0_37, %c0_38] : memref<1x128xf32, #tpu.memory_space<vmem>>, vector<1x128xf32>
      %110 = vector.broadcast %109 : vector<1x128xf32> to vector<8x128xf32>
      %111 = arith.addf %108, %110 : vector<8x128xf32>
      %c0_39 = arith.constant 0 : index
      %c0_40 = arith.constant 0 : index
      %112 = vector.load %arg5[%c0_39, %c0_40] : memref<8x128xf32, #tpu.memory_space<vmem>>, vector<8x128xf32>
      tpu.vector_store %arg5[%c0_39, %c0_40], %111 {strides = array<i32>} : memref<8x128xf32, #tpu.memory_space<vmem>>, vector<8x128xf32>,
    } else {
    }
    return
  }
  func.func @transform_0(%arg0: i32) -> (i32, i32, i32) {
    %c0_i32 = arith.constant 0 : i32
    %c0_i32_0 = arith.constant 0 : i32
    %c0_i32_1 = arith.constant 0 : i32
    return %arg0, %c0_i32, %c0_i32_0 : i32, i32, i32
  }
  func.func @transform_1(%arg0: i32) -> (i32, i32) {
    %c0_i32 = arith.constant 0 : i32
    %c0_i32_0 = arith.constant 0 : i32
    %c0_i32_1 = arith.constant 0 : i32
    return %c0_i32, %c0_i32_0 : i32, i32
  }
  func.func @transform_2(%arg0: i32) -> (i32, i32) {
    %c0_i32 = arith.constant 0 : i32
    %c0_i32_0 = arith.constant 0 : i32
    %c0_i32_1 = arith.constant 0 : i32
    return %c0_i32, %c0_i32_0 : i32, i32
  }
  func.func @transform_3(%arg0: i32) -> (i32, i32) {
    %c0_i32 = arith.constant 0 : i32
    %c0_i32_0 = arith.constant 0 : i32
    %c0_i32_1 = arith.constant 0 : i32
    return %c0_i32, %c0_i32_0 : i32, i32
  }
  func.func @transform_4(%arg0: i32) -> (i32, i32) {
    %c0_i32 = arith.constant 0 : i32
    %c0_i32_0 = arith.constant 0 : i32
    %c0_i32_1 = arith.constant 0 : i32
    return %c0_i32, %c0_i32_0 : i32, i32
  }
}

</mosaic_0001>

<llo_original>
// kernel: tpu_custom_call.1
$region0: #{tpu_custom_call.1}
  #allocation0 [shape = 'u32[]', space=smem, size = 0x4, offset = 0x4, fixed_abs, tag = 'smem constant byte address 0x4 - core index']
  #allocation1 [shape = 'u32[144,128]{1,0:T(1,128)}', space=vmem, size = 0x12000, scoped, tag = 'internal scratch']
  #allocation2 [shape = 'f32[8,32]{1,0:T(8,128)}', space=vmem, size = 0x1000, scoped, tag = 'scratch operand']
  #allocation3 [shape = 'f32[8,32]{1,0:T(8,128)}', space=vmem, size = 0x1000, scoped, tag = 'scratch operand']
  %s0 = inlined_call_operand.hbm [shape: bf16[8,8,128], index: 0, kind: input, shape index: {}]
  %s1 = inlined_call_operand.hbm [shape: bf16[32,128], index: 1, kind: input, shape index: {}]
  %s2 = inlined_call_operand.hbm [shape: bf16[32,128], index: 2, kind: input, shape index: {}]
  %s3 = inlined_call_operand.vmem [shape: f32[1,128], index: 3, kind: input, shape index: {}]
  %s4 = inlined_call_operand.hbm [shape: f32[8,128], index: 4, kind: output, shape index: {}]
  %s5 = sld [smem:[#allocation0]]
  $region69: #{tpu_custom_call.1} parent=0
    _
  %s7 = ssub.s32 1, %s5
  %s8 = scalar_select 0, %s7, %s5
  $region1: #{tpu_custom_call.1} parent=0
    #allocation4 [shape = 'u8[16384]{0}', space=vmem, size = 0x4000, scoped, tag = 'input window, operand 0']
    #allocation5 [shape = 's32[2]{0}', space=sflag, size = 0x8, scoped, tag = 'scoped memory for tpu_custom_call.1']
    #allocation6 [shape = 's32[2]{0}', space=sflag, size = 0x8, scoped, tag = 'scoped memory for tpu_custom_call.1']
    #allocation7 [shape = 'u8[8192]{0}', space=vmem, size = 0x2000, scoped, tag = 'input window, operand 1, single buffered']
    #allocation8 [shape = 's32[1]{0}', space=sflag, size = 0x4, scoped, tag = 'scoped memory for tpu_custom_call.1']
    #allocation9 [shape = 'u8[8192]{0}', space=vmem, size = 0x2000, scoped, tag = 'input window, operand 2, single buffered']
    #allocation10 [shape = 'u8[4096]{0}', space=vmem, size = 0x1000, scoped, tag = 'output window, operand 0, single buffered']
    %9 = vsyncpa [#allocation5], 0
    %s10 = scalar_lea.sflag [#allocation5], 1
    %11 = vsyncpa %s10, 0
    %12 = vsyncpa [#allocation8], 0
    %13 = vsyncpa [#allocation6], 0
    loop: start=0, step=1, limit=4
    $region2: #{tpu_custom_call.1} parent=1 // loop_pre_header
      _
    $region3: #{tpu_custom_call.1} parent=1 // loop_header
      %s15 = sphi 0, %s19
      %p16 = scmp.ge.s32.totalorder %s15, 4
      %s25 = sphi 0, %s27
      %s28 = sphi 0, %s25
      %s29 = sphi 0, %s28
      %s45 = sphi 0, %s29
      %s49 = sphi 0, %s49
      %s51 = sphi 0, %s49
      %s52 = sphi 0, %s51
      %s66 = sphi 0, %s52
      %s70 = sphi 0, %s70
      %s72 = sphi 0, %s70
      %s73 = sphi 0, %s72
      %s87 = sphi 0, %s73
      %s91 = sphi 0, %s91
      %s93 = sphi 0, %s91
      %s94 = sphi 0, %s93
      %s108 = sphi 0, %s94
      %s112 = sphi 0, %s112
      %s114 = sphi 0, %s112
      %s115 = sphi 0, %s114
      %s129 = sphi 0, %s115
    $region4: #{tpu_custom_call.1} parent=1 // loop_header_branch
      %18 = sbr.rel (%p16) target = $region8
    $region5: #{tpu_custom_call.1} parent=1 // loop_body
      %s20 = ssub.s32 %s15, 1
      %s21 = ssub.s32 %s15, 2
      %s22 = sadd.s32 %s15, 1
      %s23 = ssub.s32 %s15, %s22
      %p24 = scmp.eq.s32.totalorder %s23, 0
      %s26 = sadd.s32 %s25, 1
      %s27 = scalar_select %p24, %s25, %s26
      %p30 = pneg %p24
      %p31 = scmp.eq.s32.totalorder %s15, 1
      %p32 = por %p30, %p31
      %p33 = scmp.ne.s32.totalorder %s25, %s28
      %p34 = scmp.eq.s32.totalorder %s15, 0
      %p35 = por %p33, %p34
      %p36 = scmp.ne.s32.totalorder %s25, %s28
      %p37 = scmp.eq.s32.totalorder %s20, 1
      %p38 = por %p36, %p37
      %p39 = scmp.ne.s32.totalorder %s28, %s29
      %p40 = scmp.eq.s32.totalorder %s20, 0
      %p41 = por %p39, %p40
      %p42 = scmp.ne.s32.totalorder %s28, %s29
      %p43 = scmp.eq.s32.totalorder %s21, 1
      %p44 = por %p42, %p43
      %p46 = scmp.ne.s32.totalorder %s29, %s45
      %p47 = scmp.eq.s32.totalorder %s21, 0
      %p48 = por %p46, %p47
      %s50 = sadd.s32 %s49, 1
      %p53 = scmp.eq.s32.totalorder %s15, 1
      %p54 = scmp.ne.s32.totalorder %s49, %s51
      %p55 = scmp.eq.s32.totalorder %s15, 0
      %p56 = por %p54, %p55
      %p57 = scmp.ne.s32.totalorder %s49, %s51
      %p58 = scmp.eq.s32.totalorder %s20, 1
      %p59 = por %p57, %p58
      %p60 = scmp.ne.s32.totalorder %s51, %s52
      %p61 = scmp.eq.s32.totalorder %s20, 0
      %p62 = por %p60, %p61
      %p63 = scmp.ne.s32.totalorder %s51, %s52
      %p64 = scmp.eq.s32.totalorder %s21, 1
      %p65 = por %p63, %p64
      %p67 = scmp.ne.s32.totalorder %s52, %s66
      %p68 = scmp.eq.s32.totalorder %s21, 0
      %p69 = por %p67, %p68
      %s71 = sadd.s32 %s70, 1
      %p74 = scmp.eq.s32.totalorder %s15, 1
      %p75 = scmp.ne.s32.totalorder %s70, %s72
      %p76 = scmp.eq.s32.totalorder %s15, 0
      %p77 = por %p75, %p76
      %p78 = scmp.ne.s32.totalorder %s70, %s72
      %p79 = scmp.eq.s32.totalorder %s20, 1
      %p80 = por %p78, %p79
      %p81 = scmp.ne.s32.totalorder %s72, %s73
      %p82 = scmp.eq.s32.totalorder %s20, 0
      %p83 = por %p81, %p82
      %p84 = scmp.ne.s32.totalorder %s72, %s73
      %p85 = scmp.eq.s32.totalorder %s21, 1
      %p86 = por %p84, %p85
      %p88 = scmp.ne.s32.totalorder %s73, %s87
      %p89 = scmp.eq.s32.totalorder %s21, 0
      %p90 = por %p88, %p89
      %s92 = sadd.s32 %s91, 1
      %p95 = scmp.eq.s32.totalorder %s15, 1
      %p96 = scmp.ne.s32.totalorder %s91, %s93
      %p97 = scmp.eq.s32.totalorder %s15, 0
      %p98 = por %p96, %p97
      %p99 = scmp.ne.s32.totalorder %s91, %s93
      %p100 = scmp.eq.s32.totalorder %s20, 1
      %p101 = por %p99, %p100
      %p102 = scmp.ne.s32.totalorder %s93, %s94
      %p103 = scmp.eq.s32.totalorder %s20, 0
      %p104 = por %p102, %p103
      %p105 = scmp.ne.s32.totalorder %s93, %s94
      %p106 = scmp.eq.s32.totalorder %s21, 1
      %p107 = por %p105, %p106
      %p109 = scmp.ne.s32.totalorder %s94, %s108
      %p110 = scmp.eq.s32.totalorder %s21, 0
      %p111 = por %p109, %p110
      %s113 = sadd.s32 %s112, 1
      %p116 = scmp.eq.s32.totalorder %s15, 1
      %p117 = scmp.ne.s32.totalorder %s112, %s114
      %p118 = scmp.eq.s32.totalorder %s15, 0
      %p119 = por %p117, %p118
      %p120 = scmp.ne.s32.totalorder %s112, %s114
      %p121 = scmp.eq.s32.totalorder %s20, 1
      %p122 = por %p120, %p121
      %p123 = scmp.ne.s32.totalorder %s114, %s115
      %p124 = scmp.eq.s32.totalorder %s20, 0
      %p125 = por %p123, %p124
      %p126 = scmp.ne.s32.totalorder %s114, %s115
      %p127 = scmp.eq.s32.totalorder %s21, 1
      %p128 = por %p126, %p127
      %p130 = scmp.ne.s32.totalorder %s115, %s129
      %p131 = scmp.eq.s32.totalorder %s21, 0
      %p132 = por %p130, %p131
      %p133 = scmp.le.s32.totalorder 1, %s15
      %p134 = scmp.lt.s32.totalorder %s15, 3
      %p135 = pnand %p133, %p134
      %p136 = pneg %p135
      // Predicated region
      $region9: #{tpu_custom_call.1} parent=5 // pred_check
        _
      $region10: #{tpu_custom_call.1} parent=5 // pred_check_branch
        %138 = sbr.rel (%p135) target = $region12
      $region11: #{tpu_custom_call.1} parent=5 // pred_region
        %s139 = ssub.s32 %s15, 1
        // Predicated region
        $region13: #{tpu_custom_call.1} parent=11 // pred_check
          %p140 = pneg %p62
        $region14: #{tpu_custom_call.1} parent=11 // pred_check_branch
          %142 = sbr.rel (%p140) target = $region16
        $region15: #{tpu_custom_call.1} parent=11 // pred_region
          %s144 = ssub.s32 256, 256
          %145 = vsyncadd [#allocation8], %s144
          %s146 = sshll.u32 [#allocation7], 4
          %s147 = int_to_ptr.vmem [resolvable:$true] %s146
          %152 = dma.hbm_to_vmem [thread:$0]  %s1, 256, %s147, [#allocation8], 64, 64, 4
        $region16: #{tpu_custom_call.1} parent=11 // pred_fallthru
          _
        // Predicated region
        $region17: #{tpu_custom_call.1} parent=11 // pred_check
          %p153 = pneg %p83
        $region18: #{tpu_custom_call.1} parent=11 // pred_check_branch
          %155 = sbr.rel (%p153) target = $region20
        $region19: #{tpu_custom_call.1} parent=11 // pred_region
          %s157 = ssub.s32 256, 256
          %158 = vsyncadd [#allocation8], %s157
          %s159 = sshll.u32 [#allocation9], 4
          %s160 = int_to_ptr.vmem [resolvable:$true] %s159
          %165 = dma.hbm_to_vmem [thread:$0]  %s2, 256, %s160, [#allocation8], 64, 64, 4
        $region20: #{tpu_custom_call.1} parent=11 // pred_fallthru
          _
        // Predicated region
        $region21: #{tpu_custom_call.1} parent=11 // pred_check
          %p166 = pneg %p104
        $region22: #{tpu_custom_call.1} parent=11 // pred_check_branch
          %168 = sbr.rel (%p166) target = $region24
        $region23: #{tpu_custom_call.1} parent=11 // pred_region
          _
        $region24: #{tpu_custom_call.1} parent=11 // pred_fallthru
          _
      $region12: #{tpu_custom_call.1} parent=5 // pred_fallthru
        _
      %p169 = scmp.lt.s32.totalorder %s15, 2
      // Predicated region
      $region25: #{tpu_custom_call.1} parent=5 // pred_check
        %p170 = pneg %p169
      $region26: #{tpu_custom_call.1} parent=5 // pred_check_branch
        %172 = sbr.rel (%p170) target = $region28
      $region27: #{tpu_custom_call.1} parent=5 // pred_region
        // Predicated region
        $region29: #{tpu_custom_call.1} parent=27 // pred_check
          %p173 = pneg %p35
        $region30: #{tpu_custom_call.1} parent=27 // pred_check_branch
          %175 = sbr.rel (%p173) target = $region32
        $region31: #{tpu_custom_call.1} parent=27 // pred_region
          %s176 = sand.u32 %s25, 1
          %s177 = scalar_lea.sflag [#allocation5], %s176
          %s178 = sand.u32 %s25, 1
          %s179 = smul.addr %s178, 16
          %s180 = scalar_lea.vmem [#allocation4], %s179
          %s181 = smul.u32 4, %s15
          %s183 = ssub.s32 256, 256
          %184 = vsyncadd %s177, %s183
          %s185 = smul.addr %s181, 64
          %s186 = scalar_lea.hbm %s0, %s185
          %s187 = sshll.u32 %s180, 4
          %s188 = int_to_ptr.vmem [resolvable:$true] %s187
          %193 = dma.hbm_to_vmem [thread:$0]  %s186, 256, %s188, %s177, 64, 64, 4
        $region32: #{tpu_custom_call.1} parent=27 // pred_fallthru
          _
      $region28: #{tpu_custom_call.1} parent=5 // pred_fallthru
        _
      %p194 = scmp.le.s32.totalorder 1, %s15
      %p195 = scmp.lt.s32.totalorder %s15, 3
      %p196 = pnand %p194, %p195
      %p197 = pneg %p196
      // Predicated region
      $region33: #{tpu_custom_call.1} parent=5 // pred_check
        _
      $region34: #{tpu_custom_call.1} parent=5 // pred_check_branch
        %199 = sbr.rel (%p196) target = $region36
      $region35: #{tpu_custom_call.1} parent=5 // pred_region
        %s200 = ssub.s32 %s15, 1
        %s201 = sand.u32 %s28, 1
        %s202 = scalar_lea.sflag [#allocation5], %s201
        %s203 = sand.u32 %s28, 1
        %s204 = smul.addr %s203, 16
        %s205 = scalar_lea.vmem [#allocation4], %s204
        // Predicated region
        $region37: #{tpu_custom_call.1} parent=35 // pred_check
          %p206 = pneg %p41
        $region38: #{tpu_custom_call.1} parent=35 // pred_check_branch
          %208 = sbr.rel (%p206) target = $region40
        $region39: #{tpu_custom_call.1} parent=35 // pred_region
          %209 = dma.done %s202, 256
        $region40: #{tpu_custom_call.1} parent=35 // pred_fallthru
          _
        // Predicated region
        $region41: #{tpu_custom_call.1} parent=35 // pred_check
          %p210 = pneg %p62
        $region42: #{tpu_custom_call.1} parent=35 // pred_check_branch
          %212 = sbr.rel (%p210) target = $region44
        $region43: #{tpu_custom_call.1} parent=35 // pred_region
          %213 = dma.done [#allocation8], 256
        $region44: #{tpu_custom_call.1} parent=35 // pred_fallthru
          _
        // Predicated region
        $region45: #{tpu_custom_call.1} parent=35 // pred_check
          %p214 = pneg %p83
        $region46: #{tpu_custom_call.1} parent=35 // pred_check_branch
          %216 = sbr.rel (%p214) target = $region48
        $region47: #{tpu_custom_call.1} parent=35 // pred_region
          %217 = dma.done [#allocation8], 256
        $region48: #{tpu_custom_call.1} parent=35 // pred_fallthru
          _
        %s218 = sand.u32 %s28, 1
        %s219 = scalar_lea.sflag [#allocation5], %s218
        %s220 = sand.u32 %s28, 1
        %s221 = smul.addr %s220, 16
        %s222 = scalar_lea.vmem [#allocation4], %s221
        %p223 = pneg %p41
        %p224 = pneg %p38
        %p225 = pneg %p62
        %p226 = pneg %p59
        %p227 = pneg %p83
        %p228 = pneg %p80
        %p229 = pneg %p104
        %p230 = pneg %p101
        %p231 = pneg %p125
        %p232 = pneg %p122
        %s233 = smul.u32 4, %s20
        %p235 = scmp.eq.s32.totalorder %s20, 0
        // Predicated region
        $region49: #{tpu_custom_call.1} parent=35 // pred_check
          %p236 = pneg %p235
        $region50: #{tpu_custom_call.1} parent=35 // pred_check_branch
          %238 = sbr.rel (%p236) target = $region52
        $region51: #{tpu_custom_call.1} parent=35 // pred_region
          %vm239 = vcmask 261120
          %240 = vst.msk [vmem:[#allocation2] sm:$0xff] %vm239, 0.0
          %241 = vst.msk [vmem:[#allocation3] sm:$0xff] %vm239, 0.0
        $region52: #{tpu_custom_call.1} parent=35 // pred_fallthru
          _
        %v242 = vld [vmem:[#allocation2] sm:$0xff]
        %v243 = vld [vmem:[#allocation3] sm:$0xff]
        %v244 = vld [vmem:[%s205] sm:$0xf]
        %v245 = vunpack.c.l.bf16 %v244
        %v246 = vpack.c.bf16 %v242, %v242
        %v247 = vld [vmem:[#allocation7] sm:$0xf]
        %v248 = vld [vmem:[#allocation7 + $0x4] sm:$0xf]
        %v249 = vld [vmem:[#allocation7 + $0x8] sm:$0xf]
        %v250 = vld [vmem:[#allocation7 + $0xc] sm:$0xf]
        %v255 = vunpack.c.l.b16 %v247
        %v256 = vunpack.c.l.b16 %v248
        %v257 = vunpack.c.l.b16 %v249
        %v258 = vunpack.c.l.b16 %v250
        %v259 = vpack.c.b16 %v256, %v255
        %v260 = vpack.c.b16 %v258, %v257
        %vm263 = vcmask 261120
        %v265 = vsel %vm263, %v246, 0
        %267 = vmatprep.subr.bf16.mxu0 0
        %268 = vmatpush1.bf16.msra.mxu0 %v259
        %269 = vmatprep.subr.bf16.mxu0 0
        %270 = vmatpush1.bf16.msra.mxu0 %v260
        %271 = vmatprep.subr.bf16.mxu0 0
        %272 = vmatpush1.bf16.msra.mxu0 0
        %273 = vmatprep.subr.bf16.mxu0 0
        %274 = vmatpush1.bf16.msra.mxu0 0
        %275 = vmatprep.subr.bf16.mxu0 0
        %276 = vmatpush1.bf16.msra.mxu0 0
        %277 = vmatprep.subr.bf16.mxu0 0
        %278 = vmatpush1.bf16.msra.mxu0 0
        %279 = vmatprep.subr.bf16.mxu0 0
        %280 = vmatpush1.bf16.msra.mxu0 0
        %281 = vmatprep.subr.bf16.mxu0 0
        %282 = vmatpush1.bf16.msra.mxu0 0
        %283 = vmatprep.subr.bf16.mxu0 0
        %284 = vmatpush1.bf16.msra.mxu0 0
        %285 = vmatprep.subr.bf16.mxu0 0
        %286 = vmatpush1.bf16.msra.mxu0 0
        %287 = vmatprep.subr.bf16.mxu0 0
        %288 = vmatpush1.bf16.msra.mxu0 0
        %289 = vmatprep.subr.bf16.mxu0 0
        %290 = vmatpush1.bf16.msra.mxu0 0
        %291 = vmatprep.subr.bf16.mxu0 0
        %292 = vmatpush1.bf16.msra.mxu0 0
        %293 = vmatprep.subr.bf16.mxu0 0
        %294 = vmatpush1.bf16.msra.mxu0 0
        %295 = vmatprep.subr.bf16.mxu0 0
        %296 = vmatpush1.bf16.msra.mxu0 0
        %297 = vmatprep.subr.bf16.mxu0 0
        %298 = vmatpush1.bf16.msra.mxu0 0
        %299 = vmatprep.mubr.bf16.mxu0 0
        %300 = vmatmul.mubr.bf16.gmra.mrb[0].mxu0 %v265
        %v301 = vpop.f32.mrb[0].mxu0
        %v302 = vadd.f32 0.0, %v301
        %v303 = vpop.f32.mrb[0].mxu0
        %v304 = vpop.f32.mrb[0].mxu0
        %v305 = vpop.f32.mrb[0].mxu0
        %306 = vdwg.mxu0
        %v307 = vadd.f32 %v245, %v302
        %v308 = vxor.u32 %v307, 2147483648
        %v309 = vmul.f32 %v308, 1.442695
        %v310 = vpow.pop %v309
        %v311 = vadd.f32 %v310, 1.0
        %v312 = vrcp.pop %v311
        %v313 = vmul.f32 1.0, %v312
        %v314 = vtanh.pop %v307
        %316 = vrot.lane.b32.xlu0 %v243, 32
        %v317 = vpop.permute.xlu0 %316
        %v319 = vmul.f32 %v313, %v317
        %321 = vrot.lane.b32.xlu0 %v314, 32
        %v322 = vpop.permute.xlu0 %321
        %v324 = vmul.f32 %v313, %v322
        %326 = vrot.lane.b32.xlu0 %v324, 32
        %v327 = vpop.permute.xlu0 %326
        %v329 = vadd.f32 %v319, %v327
        %v330 = vtanh.pop %v329
        %332 = vrot.lane.b32.xlu0 %v330, 32
        %v333 = vpop.permute.xlu0 %332
        %v335 = vmul.f32 %v313, %v333
        %s336 = scalar_lea.vmem %s205, 4 [#allocation4]
        %v337 = vld [vmem:[%s336] sm:$0xf]
        %v338 = vunpack.c.l.bf16 %v337
        %v339 = vpack.c.bf16 %v335, %v335
        %341 = vrot.lane.b32.xlu0 %v339, 64
        %v342 = vpop.permute.xlu0 %341
        %v344 = vsel %vm263, %v342, 0
        %346 = vmatprep.subr.bf16.mxu0 0
        %347 = vmatpush1.bf16.msra.mxu0 %v259
        %348 = vmatprep.subr.bf16.mxu0 0
        %349 = vmatpush1.bf16.msra.mxu0 %v260
        %350 = vmatprep.subr.bf16.mxu0 0
        %351 = vmatpush1.bf16.msra.mxu0 0
        %352 = vmatprep.subr.bf16.mxu0 0
        %353 = vmatpush1.bf16.msra.mxu0 0
        %354 = vmatprep.subr.bf16.mxu0 0
        %355 = vmatpush1.bf16.msra.mxu0 0
        %356 = vmatprep.subr.bf16.mxu0 0
        %357 = vmatpush1.bf16.msra.mxu0 0
        %358 = vmatprep.subr.bf16.mxu0 0
        %359 = vmatpush1.bf16.msra.mxu0 0
        %360 = vmatprep.subr.bf16.mxu0 0
        %361 = vmatpush1.bf16.msra.mxu0 0
        %362 = vmatprep.subr.bf16.mxu0 0
        %363 = vmatpush1.bf16.msra.mxu0 0
        %364 = vmatprep.subr.bf16.mxu0 0
        %365 = vmatpush1.bf16.msra.mxu0 0
        %366 = vmatprep.subr.bf16.mxu0 0
        %367 = vmatpush1.bf16.msra.mxu0 0
        %368 = vmatprep.subr.bf16.mxu0 0
        %369 = vmatpush1.bf16.msra.mxu0 0
        %370 = vmatprep.subr.bf16.mxu0 0
        %371 = vmatpush1.bf16.msra.mxu0 0
        %372 = vmatprep.subr.bf16.mxu0 0
        %373 = vmatpush1.bf16.msra.mxu0 0
        %374 = vmatprep.subr.bf16.mxu0 0
        %375 = vmatpush1.bf16.msra.mxu0 0
        %376 = vmatprep.subr.bf16.mxu0 0
        %377 = vmatpush1.bf16.msra.mxu0 0
        %378 = vmatprep.mubr.bf16.mxu0 0
        %379 = vmatmul.mubr.bf16.gmra.mrb[0].mxu0 %v344
        %v380 = vpop.f32.mrb[0].mxu0
        %v381 = vadd.f32 0.0, %v380
        %v382 = vpop.f32.mrb[0].mxu0
        %v383 = vpop.f32.mrb[0].mxu0
        %v384 = vpop.f32.mrb[0].mxu0
        %385 = vdwg.mxu0
        %v386 = vadd.f32 %v338, %v381
        %v387 = vxor.u32 %v386, 2147483648
        %v388 = vmul.f32 %v387, 1.442695
        %v389 = vpow.pop %v388
        %v390 = vadd.f32 %v389, 1.0
        %v391 = vrcp.pop %v390
        %v392 = vmul.f32 1.0, %v391
        %v393 = vtanh.pop %v386
        %v394 = vmul.f32 %v392, %v329
        %396 = vrot.lane.b32.xlu0 %v393, 32
        %v397 = vpop.permute.xlu0 %396
        %v399 = vmul.f32 %v392, %v397
        %401 = vrot.lane.b32.xlu0 %v399, 32
        %v402 = vpop.permute.xlu0 %401
        %v404 = vadd.f32 %v394, %v402
        %v405 = vtanh.pop %v404
        %407 = vrot.lane.b32.xlu0 %v405, 32
        %v408 = vpop.permute.xlu0 %407
        %v410 = vmul.f32 %v392, %v408
        %s411 = scalar_lea.vmem %s205, 8 [#allocation4]
        %v412 = vld [vmem:[%s411] sm:$0xf]
        %v413 = vunpack.c.l.bf16 %v412
        %v414 = vpack.c.bf16 %v410, %v410
        %416 = vrot.lane.b32.xlu0 %v414, 64
        %v417 = vpop.permute.xlu0 %416
        %v419 = vsel %vm263, %v417, 0
        %421 = vmatprep.subr.bf16.mxu0 0
        %422 = vmatpush1.bf16.msra.mxu0 %v259
        %423 = vmatprep.subr.bf16.mxu0 0
        %424 = vmatpush1.bf16.msra.mxu0 %v260
        %425 = vmatprep.subr.bf16.mxu0 0
        %426 = vmatpush1.bf16.msra.mxu0 0
        %427 = vmatprep.subr.bf16.mxu0 0
        %428 = vmatpush1.bf16.msra.mxu0 0
        %429 = vmatprep.subr.bf16.mxu0 0
        %430 = vmatpush1.bf16.msra.mxu0 0
        %431 = vmatprep.subr.bf16.mxu0 0
        %432 = vmatpush1.bf16.msra.mxu0 0
        %433 = vmatprep.subr.bf16.mxu0 0
        %434 = vmatpush1.bf16.msra.mxu0 0
        %435 = vmatprep.subr.bf16.mxu0 0
        %436 = vmatpush1.bf16.msra.mxu0 0
        %437 = vmatprep.subr.bf16.mxu0 0
        %438 = vmatpush1.bf16.msra.mxu0 0
        %439 = vmatprep.subr.bf16.mxu0 0
        %440 = vmatpush1.bf16.msra.mxu0 0
        %441 = vmatprep.subr.bf16.mxu0 0
        %442 = vmatpush1.bf16.msra.mxu0 0
        %443 = vmatprep.subr.bf16.mxu0 0
        %444 = vmatpush1.bf16.msra.mxu0 0
        %445 = vmatprep.subr.bf16.mxu0 0
        %446 = vmatpush1.bf16.msra.mxu0 0
        %447 = vmatprep.subr.bf16.mxu0 0
        %448 = vmatpush1.bf16.msra.mxu0 0
        %449 = vmatprep.subr.bf16.mxu0 0
        %450 = vmatpush1.bf16.msra.mxu0 0
        %451 = vmatprep.subr.bf16.mxu0 0
        %452 = vmatpush1.bf16.msra.mxu0 0
        %453 = vmatprep.mubr.bf16.mxu0 0
        %454 = vmatmul.mubr.bf16.gmra.mrb[0].mxu0 %v419
        %v455 = vpop.f32.mrb[0].mxu0
        %v456 = vadd.f32 0.0, %v455
        %v457 = vpop.f32.mrb[0].mxu0
        %v458 = vpop.f32.mrb[0].mxu0
        %v459 = vpop.f32.mrb[0].mxu0
        %460 = vdwg.mxu0
        %v461 = vadd.f32 %v413, %v456
        %v462 = vxor.u32 %v461, 2147483648
        %v463 = vmul.f32 %v462, 1.442695
        %v464 = vpow.pop %v463
        %v465 = vadd.f32 %v464, 1.0
        %v466 = vrcp.pop %v465
        %v467 = vmul.f32 1.0, %v466
        %v468 = vtanh.pop %v461
        %v469 = vmul.f32 %v467, %v404
        %471 = vrot.lane.b32.xlu0 %v468, 32
        %v472 = vpop.permute.xlu0 %471
        %v474 = vmul.f32 %v467, %v472
        %476 = vrot.lane.b32.xlu0 %v474, 32
        %v477 = vpop.permute.xlu0 %476
        %v479 = vadd.f32 %v469, %v477
        %v480 = vtanh.pop %v479
        %482 = vrot.lane.b32.xlu0 %v480, 32
        %v483 = vpop.permute.xlu0 %482
        %v485 = vmul.f32 %v467, %v483
        %s486 = scalar_lea.vmem %s205, 12 [#allocation4]
        %v487 = vld [vmem:[%s486] sm:$0xf]
        %v488 = vunpack.c.l.bf16 %v487
        %v489 = vpack.c.bf16 %v485, %v485
        %491 = vrot.lane.b32.xlu0 %v489, 64
        %v492 = vpop.permute.xlu0 %491
        %v494 = vsel %vm263, %v492, 0
        %496 = vmatprep.subr.bf16.mxu0 0
        %497 = vmatpush1.bf16.msra.mxu0 %v259
        %498 = vmatprep.subr.bf16.mxu0 0
        %499 = vmatpush1.bf16.msra.mxu0 %v260
        %500 = vmatprep.subr.bf16.mxu0 0
        %501 = vmatpush1.bf16.msra.mxu0 0
        %502 = vmatprep.subr.bf16.mxu0 0
        %503 = vmatpush1.bf16.msra.mxu0 0
        %504 = vmatprep.subr.bf16.mxu0 0
        %505 = vmatpush1.bf16.msra.mxu0 0
        %506 = vmatprep.subr.bf16.mxu0 0
        %507 = vmatpush1.bf16.msra.mxu0 0
        %508 = vmatprep.subr.bf16.mxu0 0
        %509 = vmatpush1.bf16.msra.mxu0 0
        %510 = vmatprep.subr.bf16.mxu0 0
        %511 = vmatpush1.bf16.msra.mxu0 0
        %512 = vmatprep.subr.bf16.mxu0 0
        %513 = vmatpush1.bf16.msra.mxu0 0
        %514 = vmatprep.subr.bf16.mxu0 0
        %515 = vmatpush1.bf16.msra.mxu0 0
        %516 = vmatprep.subr.bf16.mxu0 0
        %517 = vmatpush1.bf16.msra.mxu0 0
        %518 = vmatprep.subr.bf16.mxu0 0
        %519 = vmatpush1.bf16.msra.mxu0 0
        %520 = vmatprep.subr.bf16.mxu0 0
        %521 = vmatpush1.bf16.msra.mxu0 0
        %522 = vmatprep.subr.bf16.mxu0 0
        %523 = vmatpush1.bf16.msra.mxu0 0
        %524 = vmatprep.subr.bf16.mxu0 0
        %525 = vmatpush1.bf16.msra.mxu0 0
        %526 = vmatprep.subr.bf16.mxu0 0
        %527 = vmatpush1.bf16.msra.mxu0 0
        %528 = vmatprep.mubr.bf16.mxu0 0
        %529 = vmatmul.mubr.bf16.gmra.mrb[0].mxu0 %v494
        %v530 = vpop.f32.mrb[0].mxu0
        %v531 = vadd.f32 0.0, %v530
        %v532 = vpop.f32.mrb[0].mxu0
        %v533 = vpop.f32.mrb[0].mxu0
        %v534 = vpop.f32.mrb[0].mxu0
        %535 = vdwg.mxu0
        %v536 = vadd.f32 %v488, %v531
        %v537 = vxor.u32 %v536, 2147483648
        %v538 = vmul.f32 %v537, 1.442695
        %v539 = vpow.pop %v538
        %v540 = vadd.f32 %v539, 1.0
        %v541 = vrcp.pop %v540
        %v542 = vmul.f32 1.0, %v541
        %v543 = vtanh.pop %v536
        %v544 = vmul.f32 %v542, %v479
        %546 = vrot.lane.b32.xlu0 %v543, 32
        %v547 = vpop.permute.xlu0 %546
        %v549 = vmul.f32 %v542, %v547
        %551 = vrot.lane.b32.xlu0 %v549, 32
        %v552 = vpop.permute.xlu0 %551
        %v554 = vadd.f32 %v544, %v552
        %v555 = vtanh.pop %v554
        %557 = vrot.lane.b32.xlu0 %v555, 32
        %v558 = vpop.permute.xlu0 %557
        %v560 = vmul.f32 %v542, %v558
        %562 = vrot.lane.b32.xlu0 %v560, 64
        %v563 = vpop.permute.xlu0 %562
        %565 = vst.msk [vmem:[#allocation2] sm:$0xff] %vm263, %v563
        %567 = vrot.lane.b32.xlu0 %v554, 96
        %v568 = vpop.permute.xlu0 %567
        %570 = vst.msk [vmem:[#allocation3] sm:$0xff] %vm263, %v568
        %p571 = scmp.eq.s32.totalorder %s20, 1
        // Predicated region
        $region53: #{tpu_custom_call.1} parent=35 // pred_check
          %p572 = pneg %p571
        $region54: #{tpu_custom_call.1} parent=35 // pred_check_branch
          %574 = sbr.rel (%p572) target = $region56
        $region55: #{tpu_custom_call.1} parent=35 // pred_region
          %v575 = vpack.c.bf16 %v560, %v560
          %v576 = vld [vmem:[#allocation9] sm:$0xf]
          %v577 = vld [vmem:[#allocation9 + $0x4] sm:$0xf]
          %v578 = vld [vmem:[#allocation9 + $0x8] sm:$0xf]
          %v579 = vld [vmem:[#allocation9 + $0xc] sm:$0xf]
          %v580 = vld [vmem:[%s3] sm:$0x1]
          %v582 = vlaneseq
          %v583 = vshrl.u32 %v582, 7
          %v584 = vsub.s32 0, %v583
          %v585 = vrot.slane %v580, %v584
          %588 = vrot.lane.b32.xlu0 %v575, 64
          %v589 = vpop.permute.xlu0 %588
          %v594 = vunpack.c.l.b16 %v576
          %v595 = vunpack.c.l.b16 %v577
          %v596 = vunpack.c.l.b16 %v578
          %v597 = vunpack.c.l.b16 %v579
          %v598 = vpack.c.b16 %v595, %v594
          %v599 = vpack.c.b16 %v597, %v596
          %v603 = vsel %vm263, %v589, 0
          %605 = vmatprep.subr.bf16.mxu0 0
          %606 = vmatpush1.bf16.msra.mxu0 %v598
          %607 = vmatprep.subr.bf16.mxu0 0
          %608 = vmatpush1.bf16.msra.mxu0 %v599
          %609 = vmatprep.subr.bf16.mxu0 0
          %610 = vmatpush1.bf16.msra.mxu0 0
          %611 = vmatprep.subr.bf16.mxu0 0
          %612 = vmatpush1.bf16.msra.mxu0 0
          %613 = vmatprep.subr.bf16.mxu0 0
          %614 = vmatpush1.bf16.msra.mxu0 0
          %615 = vmatprep.subr.bf16.mxu0 0
          %616 = vmatpush1.bf16.msra.mxu0 0
          %617 = vmatprep.subr.bf16.mxu0 0
          %618 = vmatpush1.bf16.msra.mxu0 0
          %619 = vmatprep.subr.bf16.mxu0 0
          %620 = vmatpush1.bf16.msra.mxu0 0
          %621 = vmatprep.subr.bf16.mxu0 0
          %622 = vmatpush1.bf16.msra.mxu0 0
          %623 = vmatprep.subr.bf16.mxu0 0
          %624 = vmatpush1.bf16.msra.mxu0 0
          %625 = vmatprep.subr.bf16.mxu0 0
          %626 = vmatpush1.bf16.msra.mxu0 0
          %627 = vmatprep.subr.bf16.mxu0 0
          %628 = vmatpush1.bf16.msra.mxu0 0
          %629 = vmatprep.subr.bf16.mxu0 0
          %630 = vmatpush1.bf16.msra.mxu0 0
          %631 = vmatprep.subr.bf16.mxu0 0
          %632 = vmatpush1.bf16.msra.mxu0 0
          %633 = vmatprep.subr.bf16.mxu0 0
          %634 = vmatpush1.bf16.msra.mxu0 0
          %635 = vmatprep.subr.bf16.mxu0 0
          %636 = vmatpush1.bf16.msra.mxu0 0
          %637 = vmatprep.mubr.bf16.mxu0 0
          %638 = vmatmul.mubr.bf16.gmra.mrb[0].mxu0 %v603
          %v639 = vpop.f32.mrb[0].mxu0
          %v640 = vadd.f32 %v585, %v639
          %v641 = vpop.f32.mrb[0].mxu0
          %v642 = vpop.f32.mrb[0].mxu0
          %v643 = vpop.f32.mrb[0].mxu0
          %644 = vdwg.mxu0
          %645 = vst [vmem:[#allocation10] sm:$0xff] %v640
        $region56: #{tpu_custom_call.1} parent=35 // pred_fallthru
          _
        // Predicated region
        $region57: #{tpu_custom_call.1} parent=35 // pred_check
          %p646 = pneg %p122
        $region58: #{tpu_custom_call.1} parent=35 // pred_check_branch
          %648 = sbr.rel (%p646) target = $region60
        $region59: #{tpu_custom_call.1} parent=35 // pred_region
          %s650 = ssub.s32 128, 128
          %651 = vsyncadd [#allocation6], %s650
          %s653 = sshll.u32 [#allocation10], 4
          %s654 = int_to_ptr.vmem [resolvable:$true] %s653
          %656 = dma.vmem_to_hbm [thread:$0]  %s654, 128, %s4, [#allocation6]
        $region60: #{tpu_custom_call.1} parent=35 // pred_fallthru
          _
        // Predicated region
        $region61: #{tpu_custom_call.1} parent=35 // pred_check
          %p657 = pneg %p122
        $region62: #{tpu_custom_call.1} parent=35 // pred_check_branch
          %659 = sbr.rel (%p657) target = $region64
        $region63: #{tpu_custom_call.1} parent=35 // pred_region
          %660 = dma.done [#allocation6], 128
        $region64: #{tpu_custom_call.1} parent=35 // pred_fallthru
          _
      $region36: #{tpu_custom_call.1} parent=5 // pred_fallthru
        _
      %p661 = scmp.le.s32.totalorder 2, %s15
      // Predicated region
      $region65: #{tpu_custom_call.1} parent=5 // pred_check
        %p662 = pneg %p661
      $region66: #{tpu_custom_call.1} parent=5 // pred_check_branch
        %664 = sbr.rel (%p662) target = $region68
      $region67: #{tpu_custom_call.1} parent=5 // pred_region
        %s665 = ssub.s32 %s15, 2
      $region68: #{tpu_custom_call.1} parent=5 // pred_fallthru
        _
    $region6: #{tpu_custom_call.1} parent=1 // loop_footer
      %s19 = sadd.s32 1, %s15
    $region7: #{tpu_custom_call.1} parent=1 // loop_footer_branch
      %14 = sbr.rel target = $region3
    $region8: #{tpu_custom_call.1} parent=1 // loop_exit
      _
    %666 = vsyncpa [#allocation5], 1
    %s667 = scalar_lea.sflag [#allocation5], 1
    %668 = vsyncpa %s667, 1
    %669 = vsyncpa [#allocation8], 1
    %670 = vsyncpa [#allocation6], 1
    %s671 = scalar_lea.sflag [#allocation6], 1
    %672 = vsyncpa %s671, 1

</llo_original>
